<compile_context>
chip_gen: v5e
topology: v5e:2x2
jax: 0.10.0
libtpu: 0.0.40
codegen_flags: <defaults>
</compile_context>

<pallas_src>
import jax
import jax.numpy as jnp
from jax.experimental import pallas as pl
from jax.experimental.pallas import tpu as pltpu


def _round_up(n, m):
    return (n + m - 1) // m * m


def _tpu_generation():
    """Best-effort TPU generation from the device kind string (5/6/7...)."""
    try:
        kind = jax.devices()[0].device_kind.lower()
    except Exception:
        return 6
    for g in (7, 6, 5, 4):
        if f"v{g}" in kind:
            return g
    return 6


# Per-generation batch-tile caps (rows).  v5e: lower HBM BW + single vst slot,
# little to amortize past ~2K rows.  v6e/v7x: per-step overhead dominates, so
# go big; v7x keeps the same cap but a tighter VMEM ceiling (64 MiB physical).
_BLOCK_CAP = {4: 2048, 5: 2048, 6: 8192, 7: 8192}


def _pick_block_batch(batch, gen):
    cap = _BLOCK_CAP.get(gen, 8192)
    if batch <= 128:
        return 128
    # >= 2 grid blocks whenever the batch allows (v7x: both TensorCores busy).
    tb = min(cap, _round_up(pl.cdiv(batch, 2), 128))
    nblk = pl.cdiv(batch, tb)
    if gen >= 7 and nblk > 2 and (nblk % 2):
        # Prefer an even block count for balanced megacore sharding.
        tb = min(cap, _round_up(pl.cdiv(batch, nblk + 1), 128))
    return max(tb, 128)


def _vmem_limit_bytes(tb, in_dim, out_dim, gen):
    """Explicit scoped-VMEM budget: double-buffered x/out tiles + f32 h1/h2
    temporaries (lane-padded to 128) + resident weights, with headroom."""
    lane = lambda n: _round_up(max(n, 1), 128)
    est = (2 * tb * lane(in_dim) * 4        # x tiles, f32, double-buffered
           + 2 * tb * lane(out_dim) * 4     # output tiles, f32, double-buffered
           + 3 * tb * lane(64) * 4          # h1/h2 f32 temporaries + slack
           + (1 << 20))                     # weights/biases + misc
    ceiling = (56 << 20) if gen >= 7 else (100 << 20)
    return int(min(max(est, 32 << 20), ceiling))


def critic_kernel(x_ref, w1_ref, b1_ref, w2_ref, b2_ref, w3_ref, b3_ref, o_ref):
    # In-kernel bf16 cast of x: VPU work hidden under DMA/MXU, no extra HBM pass.
    x = x_ref[...].astype(jnp.bfloat16)                            # (tb, in)

    # Layer 1: MXU matmul with f32 accumulation; bias + ReLU stay f32.
    h1 = jnp.dot(x, w1_ref[...], preferred_element_type=jnp.float32)
    h1 = jnp.maximum(h1 + b1_ref[...], 0.0)                        # (tb, 64) f32

    # Layer 2.
    h2 = jnp.dot(h1.astype(jnp.bfloat16), w2_ref[...],
                 preferred_element_type=jnp.float32)
    h2 = jnp.maximum(h2 + b2_ref[...], 0.0)                        # (tb, 32) f32

    # Layer 3, natural orientation (out_dim is tiny for a critic).
    y = jnp.dot(h2.astype(jnp.bfloat16), w3_ref[...],
                preferred_element_type=jnp.float32)                # (tb, out)
    o_ref[...] = (y + b3_ref[...]).astype(o_ref.dtype)


def critic_forward(x, params, *, block_batch=None):
    """x: (B, input_size) float32.  Returns (B, output_size) float32."""
    batch, in_dim = x.shape
    h1_dim = params["W1"].shape[1]
    h2_dim = params["W2"].shape[1]
    out_dim = params["W3"].shape[1]

    gen = _tpu_generation()
    if block_batch is None:
        block_batch = _pick_block_batch(batch, gen)
    assert block_batch % 128 == 0, "block_batch must be a multiple of 128"

    num_blocks = pl.cdiv(batch, block_batch)  # ragged last block handled by Pallas

    # Tiny weight casts stay in the wrapper; x is streamed as f32 and cast in-kernel.
    w1 = params["W1"].astype(jnp.bfloat16)
    w2 = params["W2"].astype(jnp.bfloat16)
    w3 = params["W3"].astype(jnp.bfloat16)
    b1, b2, b3 = params["b1"], params["b2"], params["b3"]

    # Weights / biases (~20 KiB total) stay resident across every grid step.
    full = lambda shape: pl.BlockSpec(shape, lambda i: (0,) * len(shape))

    weight_bytes = 2 * (in_dim * h1_dim + h1_dim * h2_dim + h2_dim * out_dim)
    cost = pl.CostEstimate(
        flops=2 * batch * (in_dim * h1_dim + h1_dim * h2_dim + h2_dim * out_dim),
        transcendentals=0,
        bytes_accessed=batch * 4 * (in_dim + out_dim) + weight_bytes,
    )

    out = pl.pallas_call(
        critic_kernel,
        out_shape=jax.ShapeDtypeStruct((batch, out_dim), jnp.float32),
        grid_spec=pltpu.PrefetchScalarGridSpec(
            num_scalar_prefetch=0,
            grid=(num_blocks,),
            in_specs=[
                pl.BlockSpec((block_batch, in_dim), lambda i: (i, 0)),  # x tile
                full((in_dim, h1_dim)),
                full((1, h1_dim)),
                full((h1_dim, h2_dim)),
                full((1, h2_dim)),
                full((h2_dim, out_dim)),
                full((1, out_dim)),
            ],
            out_specs=pl.BlockSpec((block_batch, out_dim), lambda i: (i, 0)),
        ),
        compiler_params=pltpu.CompilerParams(
            dimension_semantics=("parallel",),
            vmem_limit_bytes=_vmem_limit_bytes(block_batch, in_dim, out_dim, gen),
        ),
        cost_estimate=cost,
    )(x, w1, b1, w2, b2, w3, b3)

    return out


def init_params(key, input_size, output_size):
    """Deterministic init mimicking torch.nn.Linear default U[-1/sqrt(in), 1/sqrt(in)].
    Weights stored (in, out) so the kernel computes x @ W directly."""
    params = {}
    k = key
    dims = [(input_size, 64), (64, 32), (32, output_size)]
    for idx, (fan_in, fan_out) in enumerate(dims, start=1):
        k, kw, kb = jax.random.split(k, 3)
        bound = 1.0 / float(fan_in) ** 0.5
        params[f"W{idx}"] = jax.random.uniform(
            kw, (fan_in, fan_out), jnp.float32, -bound, bound)
        params[f"b{idx}"] = jax.random.uniform(
            kb, (1, fan_out), jnp.float32, -bound, bound)
    return params


def critic_ref(x, params):
    """Pure f32 JAX reference matching the PyTorch module."""
    h1 = jax.nn.relu(x @ params["W1"] + params["b1"])
    h2 = jax.nn.relu(h1 @ params["W2"] + params["b2"])
    return h2 @ params["W3"] + params["b3"]


if __name__ == "__main__":
    input_size = 32   # e.g. state_dim + action_dim for a critic
    output_size = 1   # scalar value output
    batch = 192       # deliberately NOT a multiple of 128: exercises ragged last block

    key = jax.random.PRNGKey(0)
    key, kx = jax.random.split(key)
    x = jax.random.normal(kx, (batch, input_size), jnp.float32)
    params = init_params(key, input_size, output_size)

    out = jax.block_until_ready(critic_forward(x, params))

    expected = critic_ref(x, params)
    assert out.shape == (batch, output_size)
    # bf16 MXU inputs (f32 accumulation) -> compare loosely against the f32 reference.
    assert jnp.allclose(out, expected, atol=5e-2, rtol=5e-2), "mismatch vs reference"

    print("KERNEL_OK")
</pallas_src>

<mosaic_0001>
module attributes {stable_mosaic.version = 11 : i64} {
  func.func @critic_kernel(%arg0: i32, %arg1: memref<128x32xf32, #tpu.memory_space<vmem>>, %arg2: memref<32x64xbf16, #tpu.memory_space<vmem>>, %arg3: memref<1x64xf32, #tpu.memory_space<vmem>>, %arg4: memref<64x32xbf16, #tpu.memory_space<vmem>>, %arg5: memref<1x32xf32, #tpu.memory_space<vmem>>, %arg6: memref<32x1xbf16, #tpu.memory_space<vmem>>, %arg7: memref<1x1xf32, #tpu.memory_space<vmem>>, %arg8: memref<128x1xf32, #tpu.memory_space<vmem>>) attributes {dimension_semantics = [#tpu.dimension_semantics<parallel>], iteration_bounds = array<i64: 2>, scalar_prefetch = 0 : i64, scratch_operands = 0 : i64, tpu.core_type = #tpu.core_type<tc>, window_params = [{transform_indices = @transform_0, window_bounds = array<i64: 128, 32>}, {pipeline_mode = #tpu.pipeline_mode<synchronous>, transform_indices = @transform_1, window_bounds = array<i64: 32, 64>}, {pipeline_mode = #tpu.pipeline_mode<synchronous>, transform_indices = @transform_2, window_bounds = array<i64: 1, 64>}, {pipeline_mode = #tpu.pipeline_mode<synchronous>, transform_indices = @transform_3, window_bounds = array<i64: 64, 32>}, {pipeline_mode = #tpu.pipeline_mode<synchronous>, transform_indices = @transform_4, window_bounds = array<i64: 1, 32>}, {pipeline_mode = #tpu.pipeline_mode<synchronous>, transform_indices = @transform_5, window_bounds = array<i64: 32, 1>}, {pipeline_mode = #tpu.pipeline_mode<synchronous>, transform_indices = @transform_6, window_bounds = array<i64: 1, 1>}, {transform_indices = @transform_7, window_bounds = array<i64: 128, 1>}]} {
    %c0 = arith.constant 0 : index
    %c0_0 = arith.constant 0 : index
    %0 = vector.load %arg1[%c0, %c0_0] : memref<128x32xf32, #tpu.memory_space<vmem>>, vector<128x32xf32>
    %1 = arith.truncf %0 : vector<128x32xf32> to vector<128x32xbf16>
    %c0_1 = arith.constant 0 : index
    %c0_2 = arith.constant 0 : index
    %2 = vector.load %arg2[%c0_1, %c0_2] : memref<32x64xbf16, #tpu.memory_space<vmem>>, vector<32x64xbf16>
    %cst = arith.constant dense<0.000000e+00> : vector<128x64xf32>
    %3 = tpu.matmul %1, %2, %cst {dimension_numbers = #tpu.dot_dimension_numbers<[1], [0], [0], [1], [0, 0, 1, 1], [], []>} : vector<128x32xbf16>, vector<32x64xbf16>, vector<128x64xf32> -> vector<128x64xf32>
    %c0_3 = arith.constant 0 : index
    %c0_4 = arith.constant 0 : index
    %4 = vector.load %arg3[%c0_3, %c0_4] : memref<1x64xf32, #tpu.memory_space<vmem>>, vector<1x64xf32>
    %5 = vector.broadcast %4 : vector<1x64xf32> to vector<128x64xf32>
    %6 = arith.addf %3, %5 : vector<128x64xf32>
    %cst_5 = arith.constant 0.000000e+00 : f32
    %7 = vector.broadcast %cst_5 : f32 to vector<128x64xf32>
    %8 = arith.maximumf %6, %7 : vector<128x64xf32>
    %9 = arith.truncf %8 : vector<128x64xf32> to vector<128x64xbf16>
    %c0_6 = arith.constant 0 : index
    %c0_7 = arith.constant 0 : index
    %10 = vector.load %arg4[%c0_6, %c0_7] : memref<64x32xbf16, #tpu.memory_space<vmem>>, vector<64x32xbf16>
    %cst_8 = arith.constant dense<0.000000e+00> : vector<128x32xf32>
    %11 = tpu.matmul %9, %10, %cst_8 {dimension_numbers = #tpu.dot_dimension_numbers<[1], [0], [0], [1], [0, 0, 1, 1], [], []>} : vector<128x64xbf16>, vector<64x32xbf16>, vector<128x32xf32> -> vector<128x32xf32>
    %c0_9 = arith.constant 0 : index
    %c0_10 = arith.constant 0 : index
    %12 = vector.load %arg5[%c0_9, %c0_10] : memref<1x32xf32, #tpu.memory_space<vmem>>, vector<1x32xf32>
    %13 = vector.broadcast %12 : vector<1x32xf32> to vector<128x32xf32>
    %14 = arith.addf %11, %13 : vector<128x32xf32>
    %cst_11 = arith.constant 0.000000e+00 : f32
    %15 = vector.broadcast %cst_11 : f32 to vector<128x32xf32>
    %16 = arith.maximumf %14, %15 : vector<128x32xf32>
    %17 = arith.truncf %16 : vector<128x32xf32> to vector<128x32xbf16>
    %c0_12 = arith.constant 0 : index
    %c0_13 = arith.constant 0 : index
    %18 = vector.load %arg6[%c0_12, %c0_13] : memref<32x1xbf16, #tpu.memory_space<vmem>>, vector<32x1xbf16>
    %cst_14 = arith.constant dense<0.000000e+00> : vector<128x1xf32>
    %19 = tpu.matmul %17, %18, %cst_14 {dimension_numbers = #tpu.dot_dimension_numbers<[1], [0], [0], [1], [0, 0, 1, 1], [], []>} : vector<128x32xbf16>, vector<32x1xbf16>, vector<128x1xf32> -> vector<128x1xf32>
    %c0_15 = arith.constant 0 : index
    %c0_16 = arith.constant 0 : index
    %20 = vector.load %arg7[%c0_15, %c0_16] : memref<1x1xf32, #tpu.memory_space<vmem>>, vector<1x1xf32>
    %21 = vector.broadcast %20 : vector<1x1xf32> to vector<128x1xf32>
    %22 = arith.addf %19, %21 : vector<128x1xf32>
    %c0_17 = arith.constant 0 : index
    %c0_18 = arith.constant 0 : index
    %23 = vector.load %arg8[%c0_17, %c0_18] : memref<128x1xf32, #tpu.memory_space<vmem>>, vector<128x1xf32>
    tpu.vector_store %arg8[%c0_17, %c0_18], %22 {strides = array<i32>} : memref<128x1xf32, #tpu.memory_space<vmem>>, vector<128x1xf32>,
    return
  }
  func.func @transform_0(%arg0: i32) -> (i32, i32) {
    %c0_i32 = arith.constant 0 : i32
    %c0_i32_0 = arith.constant 0 : i32
    return %arg0, %c0_i32 : i32, i32
  }
  func.func @transform_1(%arg0: i32) -> (i32, i32) {
    %c0_i32 = arith.constant 0 : i32
    %c0_i32_0 = arith.constant 0 : i32
    %c0_i32_1 = arith.constant 0 : i32
    return %c0_i32, %c0_i32_0 : i32, i32
  }
  func.func @transform_2(%arg0: i32) -> (i32, i32) {
    %c0_i32 = arith.constant 0 : i32
    %c0_i32_0 = arith.constant 0 : i32
    %c0_i32_1 = arith.constant 0 : i32
    return %c0_i32, %c0_i32_0 : i32, i32
  }
  func.func @transform_3(%arg0: i32) -> (i32, i32) {
    %c0_i32 = arith.constant 0 : i32
    %c0_i32_0 = arith.constant 0 : i32
    %c0_i32_1 = arith.constant 0 : i32
    return %c0_i32, %c0_i32_0 : i32, i32
  }
  func.func @transform_4(%arg0: i32) -> (i32, i32) {
    %c0_i32 = arith.constant 0 : i32
    %c0_i32_0 = arith.constant 0 : i32
    %c0_i32_1 = arith.constant 0 : i32
    return %c0_i32, %c0_i32_0 : i32, i32
  }
  func.func @transform_5(%arg0: i32) -> (i32, i32) {
    %c0_i32 = arith.constant 0 : i32
    %c0_i32_0 = arith.constant 0 : i32
    %c0_i32_1 = arith.constant 0 : i32
    return %c0_i32, %c0_i32_0 : i32, i32
  }
  func.func @transform_6(%arg0: i32) -> (i32, i32) {
    %c0_i32 = arith.constant 0 : i32
    %c0_i32_0 = arith.constant 0 : i32
    %c0_i32_1 = arith.constant 0 : i32
    return %c0_i32, %c0_i32_0 : i32, i32
  }
  func.func @transform_7(%arg0: i32) -> (i32, i32) {
    %c0_i32 = arith.constant 0 : i32
    %c0_i32_0 = arith.constant 0 : i32
    return %arg0, %c0_i32 : i32, i32
  }
}

</mosaic_0001>

<llo_original>
// kernel: tpu_custom_call.1
$region0: #{tpu_custom_call.1}
  #allocation0 [shape = 'u32[]', space=smem, size = 0x4, offset = 0x4, fixed_abs, tag = 'smem constant byte address 0x4 - core index']
  #allocation1 [shape = 'u32[72,128]{1,0:T(1,128)}', space=vmem, size = 0x9000, scoped, tag = 'internal scratch']
  #allocation2 [shape = 'f32[1,1]{1,0:T(1,128)S(1)}', space=vmem, size = 0x200, scoped, tag = 'scoped memory for tpu_custom_call.1']
  %s0 = inlined_call_operand.vmem [shape: f32[192,32], index: 0, kind: input, shape index: {}]
  %s1 = inlined_call_operand.vmem [shape: bf16[32,64], index: 1, kind: input, shape index: {}]
  %s2 = inlined_call_operand.vmem [shape: f32[1,64], index: 2, kind: input, shape index: {}]
  %s3 = inlined_call_operand.vmem [shape: bf16[64,32], index: 3, kind: input, shape index: {}]
  %s4 = inlined_call_operand.vmem [shape: f32[1,32], index: 4, kind: input, shape index: {}]
  %s5 = inlined_call_operand.vmem [shape: bf16[32,1], index: 5, kind: input, shape index: {}]
  %s6 = inlined_call_operand.<no memory space> [shape: f32[1,1], index: 6, kind: input, shape index: {}]
  %s7 = inlined_call_operand.vmem [shape: f32[192,1], index: 7, kind: output, shape index: {}]
  %s8 = sld [smem:[#allocation0]]
  $region109: #{tpu_custom_call.1} parent=0
    _
  %s10 = ssub.s32 1, %s8
  %s11 = scalar_select 0, %s10, %s8
  %v12 = vstv %s6
  %13 = vst [vmem:[#allocation2] sm:$0x1] %v12
  $region1: #{tpu_custom_call.1} parent=0
    #allocation3 [shape = 'u8[131072]{0}', space=vmem, size = 0x20000, scoped, tag = 'output window, operand 0']
    loop: start=0, step=1, limit=4
    $region2: #{tpu_custom_call.1} parent=1 // loop_pre_header
      _
    $region3: #{tpu_custom_call.1} parent=1 // loop_header
      %s15 = sphi 0, %s19
      %p16 = scmp.ge.s32.totalorder %s15, 4
      %s25 = sphi 0, %s27
      %s28 = sphi 0, %s25
      %s29 = sphi 0, %s28
      %s45 = sphi 0, %s29
      %s49 = sphi 0, %s49
      %s51 = sphi 0, %s49
      %s52 = sphi 0, %s51
      %s66 = sphi 0, %s52
      %s70 = sphi 0, %s70
      %s72 = sphi 0, %s70
      %s73 = sphi 0, %s72
      %s87 = sphi 0, %s73
      %s91 = sphi 0, %s91
      %s93 = sphi 0, %s91
      %s94 = sphi 0, %s93
      %s108 = sphi 0, %s94
      %s112 = sphi 0, %s112
      %s114 = sphi 0, %s112
      %s115 = sphi 0, %s114
      %s129 = sphi 0, %s115
      %s133 = sphi 0, %s133
      %s135 = sphi 0, %s133
      %s136 = sphi 0, %s135
      %s150 = sphi 0, %s136
      %s154 = sphi 0, %s154
      %s156 = sphi 0, %s154
      %s157 = sphi 0, %s156
      %s171 = sphi 0, %s157
      %s177 = sphi 0, %s179
      %s180 = sphi 0, %s177
      %s181 = sphi 0, %s180
      %s197 = sphi 0, %s181
    $region4: #{tpu_custom_call.1} parent=1 // loop_header_branch
      %18 = sbr.rel (%p16) target = $region8
    $region5: #{tpu_custom_call.1} parent=1 // loop_body
      %s20 = ssub.s32 %s15, 1
      %s21 = ssub.s32 %s15, 2
      %s22 = sadd.s32 %s15, 1
      %s23 = ssub.s32 %s15, %s22
      %p24 = scmp.eq.s32.totalorder %s23, 0
      %s26 = sadd.s32 %s25, 1
      %s27 = scalar_select %p24, %s25, %s26
      %p30 = pneg %p24
      %p31 = scmp.eq.s32.totalorder %s15, 1
      %p32 = por %p30, %p31
      %p33 = scmp.ne.s32.totalorder %s25, %s28
      %p34 = scmp.eq.s32.totalorder %s15, 0
      %p35 = por %p33, %p34
      %p36 = scmp.ne.s32.totalorder %s25, %s28
      %p37 = scmp.eq.s32.totalorder %s20, 1
      %p38 = por %p36, %p37
      %p39 = scmp.ne.s32.totalorder %s28, %s29
      %p40 = scmp.eq.s32.totalorder %s20, 0
      %p41 = por %p39, %p40
      %p42 = scmp.ne.s32.totalorder %s28, %s29
      %p43 = scmp.eq.s32.totalorder %s21, 1
      %p44 = por %p42, %p43
      %p46 = scmp.ne.s32.totalorder %s29, %s45
      %p47 = scmp.eq.s32.totalorder %s21, 0
      %p48 = por %p46, %p47
      %s50 = sadd.s32 %s49, 1
      %p53 = scmp.eq.s32.totalorder %s15, 1
      %p54 = scmp.ne.s32.totalorder %s49, %s51
      %p55 = scmp.eq.s32.totalorder %s15, 0
      %p56 = por %p54, %p55
      %p57 = scmp.ne.s32.totalorder %s49, %s51
      %p58 = scmp.eq.s32.totalorder %s20, 1
      %p59 = por %p57, %p58
      %p60 = scmp.ne.s32.totalorder %s51, %s52
      %p61 = scmp.eq.s32.totalorder %s20, 0
      %p62 = por %p60, %p61
      %p63 = scmp.ne.s32.totalorder %s51, %s52
      %p64 = scmp.eq.s32.totalorder %s21, 1
      %p65 = por %p63, %p64
      %p67 = scmp.ne.s32.totalorder %s52, %s66
      %p68 = scmp.eq.s32.totalorder %s21, 0
      %p69 = por %p67, %p68
      %s71 = sadd.s32 %s70, 1
      %p74 = scmp.eq.s32.totalorder %s15, 1
      %p75 = scmp.ne.s32.totalorder %s70, %s72
      %p76 = scmp.eq.s32.totalorder %s15, 0
      %p77 = por %p75, %p76
      %p78 = scmp.ne.s32.totalorder %s70, %s72
      %p79 = scmp.eq.s32.totalorder %s20, 1
      %p80 = por %p78, %p79
      %p81 = scmp.ne.s32.totalorder %s72, %s73
      %p82 = scmp.eq.s32.totalorder %s20, 0
      %p83 = por %p81, %p82
      %p84 = scmp.ne.s32.totalorder %s72, %s73
      %p85 = scmp.eq.s32.totalorder %s21, 1
      %p86 = por %p84, %p85
      %p88 = scmp.ne.s32.totalorder %s73, %s87
      %p89 = scmp.eq.s32.totalorder %s21, 0
      %p90 = por %p88, %p89
      %s92 = sadd.s32 %s91, 1
      %p95 = scmp.eq.s32.totalorder %s15, 1
      %p96 = scmp.ne.s32.totalorder %s91, %s93
      %p97 = scmp.eq.s32.totalorder %s15, 0
      %p98 = por %p96, %p97
      %p99 = scmp.ne.s32.totalorder %s91, %s93
      %p100 = scmp.eq.s32.totalorder %s20, 1
      %p101 = por %p99, %p100
      %p102 = scmp.ne.s32.totalorder %s93, %s94
      %p103 = scmp.eq.s32.totalorder %s20, 0
      %p104 = por %p102, %p103
      %p105 = scmp.ne.s32.totalorder %s93, %s94
      %p106 = scmp.eq.s32.totalorder %s21, 1
      %p107 = por %p105, %p106
      %p109 = scmp.ne.s32.totalorder %s94, %s108
      %p110 = scmp.eq.s32.totalorder %s21, 0
      %p111 = por %p109, %p110
      %s113 = sadd.s32 %s112, 1
      %p116 = scmp.eq.s32.totalorder %s15, 1
      %p117 = scmp.ne.s32.totalorder %s112, %s114
      %p118 = scmp.eq.s32.totalorder %s15, 0
      %p119 = por %p117, %p118
      %p120 = scmp.ne.s32.totalorder %s112, %s114
      %p121 = scmp.eq.s32.totalorder %s20, 1
      %p122 = por %p120, %p121
      %p123 = scmp.ne.s32.totalorder %s114, %s115
      %p124 = scmp.eq.s32.totalorder %s20, 0
      %p125 = por %p123, %p124
      %p126 = scmp.ne.s32.totalorder %s114, %s115
      %p127 = scmp.eq.s32.totalorder %s21, 1
      %p128 = por %p126, %p127
      %p130 = scmp.ne.s32.totalorder %s115, %s129
      %p131 = scmp.eq.s32.totalorder %s21, 0
      %p132 = por %p130, %p131
      %s134 = sadd.s32 %s133, 1
      %p137 = scmp.eq.s32.totalorder %s15, 1
      %p138 = scmp.ne.s32.totalorder %s133, %s135
      %p139 = scmp.eq.s32.totalorder %s15, 0
      %p140 = por %p138, %p139
      %p141 = scmp.ne.s32.totalorder %s133, %s135
      %p142 = scmp.eq.s32.totalorder %s20, 1
      %p143 = por %p141, %p142
      %p144 = scmp.ne.s32.totalorder %s135, %s136
      %p145 = scmp.eq.s32.totalorder %s20, 0
      %p146 = por %p144, %p145
      %p147 = scmp.ne.s32.totalorder %s135, %s136
      %p148 = scmp.eq.s32.totalorder %s21, 1
      %p149 = por %p147, %p148
      %p151 = scmp.ne.s32.totalorder %s136, %s150
      %p152 = scmp.eq.s32.totalorder %s21, 0
      %p153 = por %p151, %p152
      %s155 = sadd.s32 %s154, 1
      %p158 = scmp.eq.s32.totalorder %s15, 1
      %p159 = scmp.ne.s32.totalorder %s154, %s156
      %p160 = scmp.eq.s32.totalorder %s15, 0
      %p161 = por %p159, %p160
      %p162 = scmp.ne.s32.totalorder %s154, %s156
      %p163 = scmp.eq.s32.totalorder %s20, 1
      %p164 = por %p162, %p163
      %p165 = scmp.ne.s32.totalorder %s156, %s157
      %p166 = scmp.eq.s32.totalorder %s20, 0
      %p167 = por %p165, %p166
      %p168 = scmp.ne.s32.totalorder %s156, %s157
      %p169 = scmp.eq.s32.totalorder %s21, 1
      %p170 = por %p168, %p169
      %p172 = scmp.ne.s32.totalorder %s157, %s171
      %p173 = scmp.eq.s32.totalorder %s21, 0
      %p174 = por %p172, %p173
      %s175 = ssub.s32 %s15, %s22
      %p176 = scmp.eq.s32.totalorder %s175, 0
      %s178 = sadd.s32 %s177, 1
      %s179 = scalar_select %p176, %s177, %s178
      %p182 = pneg %p176
      %p183 = scmp.eq.s32.totalorder %s15, 1
      %p184 = por %p182, %p183
      %p185 = scmp.ne.s32.totalorder %s177, %s180
      %p186 = scmp.eq.s32.totalorder %s15, 0
      %p187 = por %p185, %p186
      %p188 = scmp.ne.s32.totalorder %s177, %s180
      %p189 = scmp.eq.s32.totalorder %s20, 1
      %p190 = por %p188, %p189
      %p191 = scmp.ne.s32.totalorder %s180, %s181
      %p192 = scmp.eq.s32.totalorder %s20, 0
      %p193 = por %p191, %p192
      %p194 = scmp.ne.s32.totalorder %s180, %s181
      %p195 = scmp.eq.s32.totalorder %s21, 1
      %p196 = por %p194, %p195
      %p198 = scmp.ne.s32.totalorder %s181, %s197
      %p199 = scmp.eq.s32.totalorder %s21, 0
      %p200 = por %p198, %p199
      %p201 = scmp.le.s32.totalorder 1, %s15
      %p202 = scmp.lt.s32.totalorder %s15, 3
      %p203 = pnand %p201, %p202
      %p204 = pneg %p203
      // Predicated region
      $region9: #{tpu_custom_call.1} parent=5 // pred_check
        _
      $region10: #{tpu_custom_call.1} parent=5 // pred_check_branch
        %206 = sbr.rel (%p203) target = $region12
      $region11: #{tpu_custom_call.1} parent=5 // pred_region
        %s207 = ssub.s32 %s15, 1
        // Predicated region
        $region13: #{tpu_custom_call.1} parent=11 // pred_check
          %p208 = pneg %p62
        $region14: #{tpu_custom_call.1} parent=11 // pred_check_branch
          %210 = sbr.rel (%p208) target = $region16
        $region15: #{tpu_custom_call.1} parent=11 // pred_region
          _
        $region16: #{tpu_custom_call.1} parent=11 // pred_fallthru
          _
        // Predicated region
        $region17: #{tpu_custom_call.1} parent=11 // pred_check
          %p211 = pneg %p83
        $region18: #{tpu_custom_call.1} parent=11 // pred_check_branch
          %213 = sbr.rel (%p211) target = $region20
        $region19: #{tpu_custom_call.1} parent=11 // pred_region
          _
        $region20: #{tpu_custom_call.1} parent=11 // pred_fallthru
          _
        // Predicated region
        $region21: #{tpu_custom_call.1} parent=11 // pred_check
          %p214 = pneg %p104
        $region22: #{tpu_custom_call.1} parent=11 // pred_check_branch
          %216 = sbr.rel (%p214) target = $region24
        $region23: #{tpu_custom_call.1} parent=11 // pred_region
          _
        $region24: #{tpu_custom_call.1} parent=11 // pred_fallthru
          _
        // Predicated region
        $region25: #{tpu_custom_call.1} parent=11 // pred_check
          %p217 = pneg %p125
        $region26: #{tpu_custom_call.1} parent=11 // pred_check_branch
          %219 = sbr.rel (%p217) target = $region28
        $region27: #{tpu_custom_call.1} parent=11 // pred_region
          _
        $region28: #{tpu_custom_call.1} parent=11 // pred_fallthru
          _
        // Predicated region
        $region29: #{tpu_custom_call.1} parent=11 // pred_check
          %p220 = pneg %p146
        $region30: #{tpu_custom_call.1} parent=11 // pred_check_branch
          %222 = sbr.rel (%p220) target = $region32
        $region31: #{tpu_custom_call.1} parent=11 // pred_region
          _
        $region32: #{tpu_custom_call.1} parent=11 // pred_fallthru
          _
        // Predicated region
        $region33: #{tpu_custom_call.1} parent=11 // pred_check
          %p223 = pneg %p167
        $region34: #{tpu_custom_call.1} parent=11 // pred_check_branch
          %225 = sbr.rel (%p223) target = $region36
        $region35: #{tpu_custom_call.1} parent=11 // pred_region
          _
        $region36: #{tpu_custom_call.1} parent=11 // pred_fallthru
          _
      $region12: #{tpu_custom_call.1} parent=5 // pred_fallthru
        _
      %p226 = scmp.lt.s32.totalorder %s15, 2
      // Predicated region
      $region37: #{tpu_custom_call.1} parent=5 // pred_check
        %p227 = pneg %p226
      $region38: #{tpu_custom_call.1} parent=5 // pred_check_branch
        %229 = sbr.rel (%p227) target = $region40
      $region39: #{tpu_custom_call.1} parent=5 // pred_region
        // Predicated region
        $region41: #{tpu_custom_call.1} parent=39 // pred_check
          %p230 = pneg %p35
        $region42: #{tpu_custom_call.1} parent=39 // pred_check_branch
          %232 = sbr.rel (%p230) target = $region44
        $region43: #{tpu_custom_call.1} parent=39 // pred_region
          %s233 = smul.u32 16, %s15
          %s234 = ssub.s32 24, %s233
          %p235 = scmp.lt.s32.totalorder %s234, 16
          %s236 = scalar_select %p235, %s234, 16
          %s237 = smul.u32 8, %s236
          %p238 = scmp.lt.s32.totalorder %s233, 23
          %s239 = scalar_select %p238, %s233, 23
          %s240 = smul.addr %s239, 8
          %s241 = scalar_lea.vmem %s0, %s240
          %s242 = smul.u32 16, %s15
          %s243 = ssub.s32 24, %s242
          %p244 = scmp.lt.s32.totalorder %s243, 16
          %s245 = scalar_select %p244, %s243, 16
          %s246 = smul.u32 8, %s245
        $region44: #{tpu_custom_call.1} parent=39 // pred_fallthru
          _
      $region40: #{tpu_custom_call.1} parent=5 // pred_fallthru
        _
      %p247 = scmp.le.s32.totalorder 1, %s15
      %p248 = scmp.lt.s32.totalorder %s15, 3
      %p249 = pnand %p247, %p248
      %p250 = pneg %p249
      // Predicated region
      $region45: #{tpu_custom_call.1} parent=5 // pred_check
        _
      $region46: #{tpu_custom_call.1} parent=5 // pred_check_branch
        %252 = sbr.rel (%p249) target = $region48
      $region47: #{tpu_custom_call.1} parent=5 // pred_region
        %s253 = ssub.s32 %s15, 1
        %s254 = smul.u32 16, %s20
        %s255 = ssub.s32 24, %s254
        %p256 = scmp.lt.s32.totalorder %s255, 16
        %s257 = scalar_select %p256, %s255, 16
        %s258 = smul.u32 8, %s257
        %p259 = scmp.lt.s32.totalorder %s254, 23
        %s260 = scalar_select %p259, %s254, 23
        %s261 = smul.addr %s260, 8
        %s262 = scalar_lea.vmem %s0, %s261
        %p263 = pneg %p41
        %p264 = pneg %p38
        %p265 = pneg %p62
        %p266 = pneg %p59
        %p267 = pneg %p83
        %p268 = pneg %p80
        %p269 = pneg %p104
        %p270 = pneg %p101
        %p271 = pneg %p125
        %p272 = pneg %p122
        %p273 = pneg %p146
        %p274 = pneg %p143
        %p275 = pneg %p167
        %p276 = pneg %p164
        %p277 = pneg %p193
        %p278 = pneg %p190
        %s279 = sand.u32 %s180, 1
        %s280 = sand.u32 %s180, 1
        %s281 = smul.addr %s280, 128
        %s282 = scalar_lea.vmem [#allocation3], %s281
        %s283 = smul.u32 16, %s20
        %s284 = ssub.s32 24, %s283
        %p285 = scmp.lt.s32.totalorder %s284, 16
        %s286 = scalar_select %p285, %s284, 16
        %s287 = smul.u32 8, %s286
        %p288 = scmp.lt.s32.totalorder %s283, 23
        %s289 = scalar_select %p288, %s283, 23
        %s290 = smul.addr %s289, 8
        %s291 = scalar_lea.vmem %s0, %s290
        %s292 = smul.u32 16, %s20
        %s293 = ssub.s32 24, %s292
        %p294 = scmp.lt.s32.totalorder %s293, 16
        %s295 = scalar_select %p294, %s293, 16
        %s296 = smul.u32 8, %s295
        %s297 = smul.u32 16, %s20
        %s298 = ssub.s32 24, %s297
        %p299 = scmp.lt.s32.totalorder %s298, 16
        %s300 = scalar_select %p299, %s298, 16
        %s301 = smul.u32 8, %s300
        %v303 = vld [vmem:[%s291] sm:$0xff]
        %v304 = vld [vmem:[%s291 + $0x8] sm:$0xff]
        %v305 = vld [vmem:[%s291 + $0x10] sm:$0xff]
        %v306 = vld [vmem:[%s291 + $0x18] sm:$0xff]
        %v307 = vld [vmem:[%s291 + $0x20] sm:$0xff]
        %v308 = vld [vmem:[%s291 + $0x28] sm:$0xff]
        %v309 = vld [vmem:[%s291 + $0x30] sm:$0xff]
        %v310 = vld [vmem:[%s291 + $0x38] sm:$0xff]
        %v311 = vld [vmem:[%s291 + $0x40] sm:$0xff]
        %v312 = vld [vmem:[%s291 + $0x48] sm:$0xff]
        %v313 = vld [vmem:[%s291 + $0x50] sm:$0xff]
        %v314 = vld [vmem:[%s291 + $0x58] sm:$0xff]
        %v315 = vld [vmem:[%s291 + $0x60] sm:$0xff]
        %v316 = vld [vmem:[%s291 + $0x68] sm:$0xff]
        %v317 = vld [vmem:[%s291 + $0x70] sm:$0xff]
        %v318 = vld [vmem:[%s291 + $0x78] sm:$0xff]
        %v319 = vpack.c.bf16 %v304, %v303
        %v320 = vpack.c.bf16 %v306, %v305
        %v321 = vpack.c.bf16 %v308, %v307
        %v322 = vpack.c.bf16 %v310, %v309
        %v323 = vpack.c.bf16 %v312, %v311
        %v324 = vpack.c.bf16 %v314, %v313
        %v325 = vpack.c.bf16 %v316, %v315
        %v326 = vpack.c.bf16 %v318, %v317
        %v327 = vld [vmem:[%s1] sm:$0xf]
        %v328 = vld [vmem:[%s1 + $0x4] sm:$0xf]
        %v329 = vld [vmem:[%s1 + $0x8] sm:$0xf]
        %v330 = vld [vmem:[%s1 + $0xc] sm:$0xf]
        %v331 = vld [vmem:[%s2] sm:$0x1]
        %v333 = vperm.slane %v331, 0
        %v339 = vunpack.c.l.b16 %v327
        %v340 = vunpack.c.l.b16 %v328
        %v341 = vunpack.c.l.b16 %v329
        %v342 = vunpack.c.l.b16 %v330
        %v343 = vpack.c.b16 %v340, %v339
        %v344 = vpack.c.b16 %v342, %v341
        %vm347 = vcmask 261120
        %v349 = vsel %vm347, %v319, 0
        %v352 = vsel %vm347, %v320, 0
        %v355 = vsel %vm347, %v321, 0
        %v358 = vsel %vm347, %v322, 0
        %v361 = vsel %vm347, %v323, 0
        %v364 = vsel %vm347, %v324, 0
        %v367 = vsel %vm347, %v325, 0
        %v370 = vsel %vm347, %v326, 0
        %372 = vmatpush.bf16.msra.mxu0 0
        %373 = vmatpush.bf16.msra.mxu0 0
        %374 = vmatpush.bf16.msra.mxu0 0
        %375 = vmatpush.bf16.msra.mxu0 0
        %376 = vmatpush.bf16.msra.mxu0 0
        %377 = vmatpush.bf16.msra.mxu0 0
        %378 = vmatpush.bf16.msra.mxu0 %v344
        %379 = vmatpush.bf16.msra.mxu0 %v343
        %380 = vmatmul.bf16.gmra.mxu0 %v349
        %v381 = vpop.f32.mrf.mxu0
        %v382 = vadd.f32 %v333, %v381
        %v383 = vpop.f32.mrf.mxu0
        %v384 = vadd.f32 %v333, %v383
        %385 = vmatmul.bf16.gmra.mxu0 %v352
        %v386 = vpop.f32.mrf.mxu0
        %v387 = vadd.f32 %v333, %v386
        %v388 = vpop.f32.mrf.mxu0
        %v389 = vadd.f32 %v333, %v388
        %390 = vmatmul.bf16.gmra.mxu0 %v355
        %v391 = vpop.f32.mrf.mxu0
        %v392 = vadd.f32 %v333, %v391
        %v393 = vpop.f32.mrf.mxu0
        %v394 = vadd.f32 %v333, %v393
        %395 = vmatmul.bf16.gmra.mxu0 %v358
        %v396 = vpop.f32.mrf.mxu0
        %v397 = vadd.f32 %v333, %v396
        %v398 = vpop.f32.mrf.mxu0
        %v399 = vadd.f32 %v333, %v398
        %400 = vmatmul.bf16.gmra.mxu0 %v361
        %v401 = vpop.f32.mrf.mxu0
        %v402 = vadd.f32 %v333, %v401
        %v403 = vpop.f32.mrf.mxu0
        %v404 = vadd.f32 %v333, %v403
        %405 = vmatmul.bf16.gmra.mxu0 %v364
        %v406 = vpop.f32.mrf.mxu0
        %v407 = vadd.f32 %v333, %v406
        %v408 = vpop.f32.mrf.mxu0
        %v409 = vadd.f32 %v333, %v408
        %410 = vmatmul.bf16.gmra.mxu0 %v367
        %v411 = vpop.f32.mrf.mxu0
        %v412 = vadd.f32 %v333, %v411
        %v413 = vpop.f32.mrf.mxu0
        %v414 = vadd.f32 %v333, %v413
        %415 = vmatmul.bf16.gmra.mxu0 %v370
        %v416 = vpop.f32.mrf.mxu0
        %v417 = vadd.f32 %v333, %v416
        %v418 = vpop.f32.mrf.mxu0
        %v419 = vadd.f32 %v333, %v418
        %420 = vdwg.mxu0
        %v421 = vmax.f32 %v382, 0.0
        %v422 = vmax.f32 %v384, 0.0
        %v423 = vmax.f32 %v387, 0.0
        %v424 = vmax.f32 %v389, 0.0
        %v425 = vmax.f32 %v392, 0.0
        %v426 = vmax.f32 %v394, 0.0
        %v427 = vmax.f32 %v397, 0.0
        %v428 = vmax.f32 %v399, 0.0
        %v429 = vmax.f32 %v402, 0.0
        %v430 = vmax.f32 %v404, 0.0
        %v431 = vmax.f32 %v407, 0.0
        %v432 = vmax.f32 %v409, 0.0
        %v433 = vmax.f32 %v412, 0.0
        %v434 = vmax.f32 %v414, 0.0
        %v435 = vmax.f32 %v417, 0.0
        %v436 = vmax.f32 %v419, 0.0
        %v437 = vpack.c.bf16 %v422, %v421
        %v438 = vpack.c.bf16 %v424, %v423
        %v439 = vpack.c.bf16 %v426, %v425
        %v440 = vpack.c.bf16 %v428, %v427
        %v441 = vpack.c.bf16 %v430, %v429
        %v442 = vpack.c.bf16 %v432, %v431
        %v443 = vpack.c.bf16 %v434, %v433
        %v444 = vpack.c.bf16 %v436, %v435
        %v445 = vld [vmem:[%s3] sm:$0xf]
        %v446 = vld [vmem:[%s3 + $0x4] sm:$0xf]
        %v447 = vld [vmem:[%s3 + $0x8] sm:$0xf]
        %v448 = vld [vmem:[%s3 + $0xc] sm:$0xf]
        %v449 = vld [vmem:[%s3 + $0x10] sm:$0xf]
        %v450 = vld [vmem:[%s3 + $0x14] sm:$0xf]
        %v451 = vld [vmem:[%s3 + $0x18] sm:$0xf]
        %v452 = vld [vmem:[%s3 + $0x1c] sm:$0xf]
        %v453 = vld [vmem:[%s4] sm:$0x1]
        %v455 = vperm.slane %v453, 0
        %v465 = vunpack.c.l.b16 %v445
        %v466 = vunpack.c.l.b16 %v446
        %v467 = vunpack.c.l.b16 %v447
        %v468 = vunpack.c.l.b16 %v448
        %v469 = vunpack.c.l.b16 %v449
        %v470 = vunpack.c.l.b16 %v450
        %v471 = vunpack.c.l.b16 %v451
        %v472 = vunpack.c.l.b16 %v452
        %v473 = vpack.c.b16 %v466, %v465
        %v474 = vpack.c.b16 %v468, %v467
        %v475 = vpack.c.b16 %v470, %v469
        %v476 = vpack.c.b16 %v472, %v471
        %vm481 = vcmask 523264
        %v483 = vsel %vm481, %v437, 0
        %v486 = vsel %vm481, %v438, 0
        %v489 = vsel %vm481, %v439, 0
        %v492 = vsel %vm481, %v440, 0
        %v495 = vsel %vm481, %v441, 0
        %v498 = vsel %vm481, %v442, 0
        %v501 = vsel %vm481, %v443, 0
        %v504 = vsel %vm481, %v444, 0
        %506 = vmatpush.bf16.msra.mxu0 0
        %507 = vmatpush.bf16.msra.mxu0 0
        %508 = vmatpush.bf16.msra.mxu0 0
        %509 = vmatpush.bf16.msra.mxu0 0
        %510 = vmatpush.bf16.msra.mxu0 %v476
        %511 = vmatpush.bf16.msra.mxu0 %v475
        %512 = vmatpush.bf16.msra.mxu0 %v474
        %513 = vmatpush.bf16.msra.mxu0 %v473
        %514 = vmatmul.bf16.gmra.mxu0 %v483
        %v515 = vpop.f32.mrf.mxu0
        %v516 = vadd.f32 %v455, %v515
        %v517 = vpop.f32.mrf.mxu0
        %v518 = vadd.f32 %v455, %v517
        %519 = vmatmul.bf16.gmra.mxu0 %v486
        %v520 = vpop.f32.mrf.mxu0
        %v521 = vadd.f32 %v455, %v520
        %v522 = vpop.f32.mrf.mxu0
        %v523 = vadd.f32 %v455, %v522
        %524 = vmatmul.bf16.gmra.mxu0 %v489
        %v525 = vpop.f32.mrf.mxu0
        %v526 = vadd.f32 %v455, %v525
        %v527 = vpop.f32.mrf.mxu0
        %v528 = vadd.f32 %v455, %v527
        %529 = vmatmul.bf16.gmra.mxu0 %v492
        %v530 = vpop.f32.mrf.mxu0
        %v531 = vadd.f32 %v455, %v530
        %v532 = vpop.f32.mrf.mxu0
        %v533 = vadd.f32 %v455, %v532
        %534 = vmatmul.bf16.gmra.mxu0 %v495
        %v535 = vpop.f32.mrf.mxu0
        %v536 = vadd.f32 %v455, %v535
        %v537 = vpop.f32.mrf.mxu0
        %v538 = vadd.f32 %v455, %v537
        %539 = vmatmul.bf16.gmra.mxu0 %v498
        %v540 = vpop.f32.mrf.mxu0
        %v541 = vadd.f32 %v455, %v540
        %v542 = vpop.f32.mrf.mxu0
        %v543 = vadd.f32 %v455, %v542
        %544 = vmatmul.bf16.gmra.mxu0 %v501
        %v545 = vpop.f32.mrf.mxu0
        %v546 = vadd.f32 %v455, %v545
        %v547 = vpop.f32.mrf.mxu0
        %v548 = vadd.f32 %v455, %v547
        %549 = vmatmul.bf16.gmra.mxu0 %v504
        %v550 = vpop.f32.mrf.mxu0
        %v551 = vadd.f32 %v455, %v550
        %v552 = vpop.f32.mrf.mxu0
        %v553 = vadd.f32 %v455, %v552
        %554 = vdwg.mxu0
        %v555 = vmax.f32 %v516, 0.0
        %v556 = vmax.f32 %v518, 0.0
        %v557 = vmax.f32 %v521, 0.0
        %v558 = vmax.f32 %v523, 0.0
        %v559 = vmax.f32 %v526, 0.0
        %v560 = vmax.f32 %v528, 0.0
        %v561 = vmax.f32 %v531, 0.0
        %v562 = vmax.f32 %v533, 0.0
        %v563 = vmax.f32 %v536, 0.0
        %v564 = vmax.f32 %v538, 0.0
        %v565 = vmax.f32 %v541, 0.0
        %v566 = vmax.f32 %v543, 0.0
        %v567 = vmax.f32 %v546, 0.0
        %v568 = vmax.f32 %v548, 0.0
        %v569 = vmax.f32 %v551, 0.0
        %v570 = vmax.f32 %v553, 0.0
        %v571 = vpack.c.bf16 %v556, %v555
        %v572 = vpack.c.bf16 %v558, %v557
        %v573 = vpack.c.bf16 %v560, %v559
        %v574 = vpack.c.bf16 %v562, %v561
        %v575 = vpack.c.bf16 %v564, %v563
        %v576 = vpack.c.bf16 %v566, %v565
        %v577 = vpack.c.bf16 %v568, %v567
        %v578 = vpack.c.bf16 %v570, %v569
        %v579 = vld [vmem:[%s5] sm:$0xf]
        %v580 = vld [vmem:[%s5 + $0x4] sm:$0xf]
        %v581 = vld [vmem:[%s5 + $0x8] sm:$0xf]
        %v582 = vld [vmem:[%s5 + $0xc] sm:$0xf]
        %v583 = vld [vmem:[#allocation2] sm:$0x1]
        %v585 = vperm.slane %v583, 0
        %v591 = vunpack.c.l.b16 %v579
        %v592 = vunpack.c.l.b16 %v580
        %v593 = vunpack.c.l.b16 %v581
        %v594 = vunpack.c.l.b16 %v582
        %v595 = vpack.c.b16 %v592, %v591
        %v596 = vpack.c.b16 %v594, %v593
        %v600 = vsel %vm347, %v571, 0
        %v603 = vsel %vm347, %v572, 0
        %v606 = vsel %vm347, %v573, 0
        %v609 = vsel %vm347, %v574, 0
        %v612 = vsel %vm347, %v575, 0
        %v615 = vsel %vm347, %v576, 0
        %v618 = vsel %vm347, %v577, 0
        %v621 = vsel %vm347, %v578, 0
        %623 = vmatpush.bf16.msra.mxu0 0
        %624 = vmatpush.bf16.msra.mxu0 0
        %625 = vmatpush.bf16.msra.mxu0 0
        %626 = vmatpush.bf16.msra.mxu0 0
        %627 = vmatpush.bf16.msra.mxu0 0
        %628 = vmatpush.bf16.msra.mxu0 0
        %629 = vmatpush.bf16.msra.mxu0 %v596
        %630 = vmatpush.bf16.msra.mxu0 %v595
        %631 = vmatmul.bf16.gmra.mxu0 %v600
        %v632 = vpop.f32.mrf.mxu0
        %v633 = vadd.f32 %v585, %v632
        %v634 = vpop.f32.mrf.mxu0
        %v635 = vadd.f32 %v585, %v634
        %636 = vmatmul.bf16.gmra.mxu0 %v603
        %v637 = vpop.f32.mrf.mxu0
        %v638 = vadd.f32 %v585, %v637
        %v639 = vpop.f32.mrf.mxu0
        %v640 = vadd.f32 %v585, %v639
        %641 = vmatmul.bf16.gmra.mxu0 %v606
        %v642 = vpop.f32.mrf.mxu0
        %v643 = vadd.f32 %v585, %v642
        %v644 = vpop.f32.mrf.mxu0
        %v645 = vadd.f32 %v585, %v644
        %646 = vmatmul.bf16.gmra.mxu0 %v609
        %v647 = vpop.f32.mrf.mxu0
        %v648 = vadd.f32 %v585, %v647
        %v649 = vpop.f32.mrf.mxu0
        %v650 = vadd.f32 %v585, %v649
        %651 = vmatmul.bf16.gmra.mxu0 %v612
        %v652 = vpop.f32.mrf.mxu0
        %v653 = vadd.f32 %v585, %v652
        %v654 = vpop.f32.mrf.mxu0
        %v655 = vadd.f32 %v585, %v654
        %656 = vmatmul.bf16.gmra.mxu0 %v615
        %v657 = vpop.f32.mrf.mxu0
        %v658 = vadd.f32 %v585, %v657
        %v659 = vpop.f32.mrf.mxu0
        %v660 = vadd.f32 %v585, %v659
        %661 = vmatmul.bf16.gmra.mxu0 %v618
        %v662 = vpop.f32.mrf.mxu0
        %v663 = vadd.f32 %v585, %v662
        %v664 = vpop.f32.mrf.mxu0
        %v665 = vadd.f32 %v585, %v664
        %666 = vmatmul.bf16.gmra.mxu0 %v621
        %v667 = vpop.f32.mrf.mxu0
        %v668 = vadd.f32 %v585, %v667
        %v669 = vpop.f32.mrf.mxu0
        %v670 = vadd.f32 %v585, %v669
        %671 = vdwg.mxu0
        %vm672 = vcmask 7168
        %673 = vst.msk [vmem:[%s282] sm:$0xff] %vm672, %v633
        %674 = vst.msk [vmem:[%s282 + $0x8] sm:$0xff] %vm672, %v635
        %675 = vst.msk [vmem:[%s282 + $0x10] sm:$0xff] %vm672, %v638
        %676 = vst.msk [vmem:[%s282 + $0x18] sm:$0xff] %vm672, %v640
        %677 = vst.msk [vmem:[%s282 + $0x20] sm:$0xff] %vm672, %v643
        %678 = vst.msk [vmem:[%s282 + $0x28] sm:$0xff] %vm672, %v645
        %679 = vst.msk [vmem:[%s282 + $0x30] sm:$0xff] %vm672, %v648
        %680 = vst.msk [vmem:[%s282 + $0x38] sm:$0xff] %vm672, %v650
        %681 = vst.msk [vmem:[%s282 + $0x40] sm:$0xff] %vm672, %v653
        %682 = vst.msk [vmem:[%s282 + $0x48] sm:$0xff] %vm672, %v655
        %683 = vst.msk [vmem:[%s282 + $0x50] sm:$0xff] %vm672, %v658
        %684 = vst.msk [vmem:[%s282 + $0x58] sm:$0xff] %vm672, %v660
        %685 = vst.msk [vmem:[%s282 + $0x60] sm:$0xff] %vm672, %v663
        %686 = vst.msk [vmem:[%s282 + $0x68] sm:$0xff] %vm672, %v665
        %687 = vst.msk [vmem:[%s282 + $0x70] sm:$0xff] %vm672, %v668
        %688 = vst.msk [vmem:[%s282 + $0x78] sm:$0xff] %vm672, %v670
        %s689 = sand.u32 %s180, 1
        %s690 = sand.u32 %s180, 1
        %s691 = smul.addr %s690, 128
        %s692 = scalar_lea.vmem [#allocation3], %s691
        // Predicated region
        $region49: #{tpu_custom_call.1} parent=47 // pred_check
          %p693 = pneg %p190
        $region50: #{tpu_custom_call.1} parent=47 // pred_check_branch
          %695 = sbr.rel (%p693) target = $region52
        $region51: #{tpu_custom_call.1} parent=47 // pred_region
          %s696 = smul.u32 16, %s20
          %s697 = ssub.s32 24, %s696
          %p698 = scmp.lt.s32.totalorder %s697, 16
          %s699 = scalar_select %p698, %s697, 16
          %s700 = smul.u32 8, %s699
          %p701 = scmp.ne.s32.totalorder 0, %s700
          %s702 = smul.addr %s696, 8
          %s703 = scalar_lea.vmem %s7, %s702
          // Predicated region
          $region53: #{tpu_custom_call.1} parent=51 // pred_check
            %p704 = pneg %p701
          $region54: #{tpu_custom_call.1} parent=51 // pred_check_branch
            %706 = sbr.rel (%p704) target = $region56
          $region55: #{tpu_custom_call.1} parent=51 // pred_region
            // Predicated region
            $region57: #{tpu_custom_call.1} parent=55 // pred_check
              _
            $region58: #{tpu_custom_call.1} parent=55 // pred_check_branch
              %708 = sbr.rel (0) target = $region60
            $region59: #{tpu_custom_call.1} parent=55 // pred_region
              // Predicated region
              $region79: #{tpu_custom_call.1} parent=59 // pred_check
                _
              $region80: #{tpu_custom_call.1} parent=59 // pred_check_branch
                %788 = sbr.rel (0) target = $region82
              $region81: #{tpu_custom_call.1} parent=59 // pred_region
                %s789 = sshrl.u32 %s699, 4
                // While loop
                $region83: #{tpu_custom_call.1} parent=81 // loop_pre_header
                  _
                $region84: #{tpu_custom_call.1} parent=81 // loop_header
                  %s791 = sphi 0, %s793
                  %p792 = scmp.ge.s32.totalorder %s791, %s789
                  %s796 = sphi 0, %s833
                  %s797 = sphi %s692, %s836
                  %s798 = sphi %s703, %s837
                $region85: #{tpu_custom_call.1} parent=81 // loop_header_branch
                  %795 = sbr.rel (%p792) target = $region89
                $region86: #{tpu_custom_call.1} parent=81 // loop_body
                  %v799 = vld [vmem:[%s797] sm:$0xff]
                  %800 = vst [vmem:[%s798] sm:$0xff] %v799
                  %v801 = vld [vmem:[%s797 + $0x8] sm:$0xff]
                  %802 = vst [vmem:[%s798 + $0x8] sm:$0xff] %v801
                  %v803 = vld [vmem:[%s797 + $0x10] sm:$0xff]
                  %804 = vst [vmem:[%s798 + $0x10] sm:$0xff] %v803
                  %v805 = vld [vmem:[%s797 + $0x18] sm:$0xff]
                  %806 = vst [vmem:[%s798 + $0x18] sm:$0xff] %v805
                  %v807 = vld [vmem:[%s797 + $0x20] sm:$0xff]
                  %808 = vst [vmem:[%s798 + $0x20] sm:$0xff] %v807
                  %v809 = vld [vmem:[%s797 + $0x28] sm:$0xff]
                  %810 = vst [vmem:[%s798 + $0x28] sm:$0xff] %v809
                  %v811 = vld [vmem:[%s797 + $0x30] sm:$0xff]
                  %812 = vst [vmem:[%s798 + $0x30] sm:$0xff] %v811
                  %v813 = vld [vmem:[%s797 + $0x38] sm:$0xff]
                  %814 = vst [vmem:[%s798 + $0x38] sm:$0xff] %v813
                  %v815 = vld [vmem:[%s797 + $0x40] sm:$0xff]
                  %816 = vst [vmem:[%s798 + $0x40] sm:$0xff] %v815
                  %v817 = vld [vmem:[%s797 + $0x48] sm:$0xff]
                  %818 = vst [vmem:[%s798 + $0x48] sm:$0xff] %v817
                  %v819 = vld [vmem:[%s797 + $0x50] sm:$0xff]
                  %820 = vst [vmem:[%s798 + $0x50] sm:$0xff] %v819
                  %v821 = vld [vmem:[%s797 + $0x58] sm:$0xff]
                  %822 = vst [vmem:[%s798 + $0x58] sm:$0xff] %v821
                  %v823 = vld [vmem:[%s797 + $0x60] sm:$0xff]
                  %824 = vst [vmem:[%s798 + $0x60] sm:$0xff] %v823
                  %v825 = vld [vmem:[%s797 + $0x68] sm:$0xff]
                  %826 = vst [vmem:[%s798 + $0x68] sm:$0xff] %v825
                  %v827 = vld [vmem:[%s797 + $0x70] sm:$0xff]
                  %828 = vst [vmem:[%s798 + $0x70] sm:$0xff] %v827
                  %v829 = vld [vmem:[%s797 + $0x78] sm:$0xff]
                  %830 = vst [vmem:[%s798 + $0x78] sm:$0xff] %v829
                  %s831 = sadd.s32 1, %s796
                  %p832 = scmp.ge.s32.totalorder %s831, %s789
                  %s833 = scalar_select %p832, 0, %s831
                  %s834 = smul.u32 %s833, 128
                  %s835 = smul.u32 %s833, 128
                  %s836 = scalar_lea.vmem %s692, %s834 [#allocation3]
                  %s837 = scalar_lea.vmem %s703, %s835
                $region87: #{tpu_custom_call.1} parent=81 // loop_footer
                  %s793 = sadd.s32 %s791, 1
                $region88: #{tpu_custom_call.1} parent=81 // loop_footer_branch
                  %790 = sbr.rel target = $region84
                $region89: #{tpu_custom_call.1} parent=81 // loop_exit
                  _
                %s838 = sshrl.u32 %s699, 4
                %s839 = sand.u32 %s699, 15
                %s840 = smul.u32 %s838, 16
                %s841 = smul.u32 8, %s840
                %s842 = scalar_lea.vmem %s692, %s841 [#allocation3]
                %s843 = smul.u32 8, %s840
                %s844 = scalar_lea.vmem %s703, %s843
                // While loop
                $region90: #{tpu_custom_call.1} parent=81 // loop_pre_header
                  _
                $region91: #{tpu_custom_call.1} parent=81 // loop_header
                  %s846 = sphi 0, %s848
                  %p847 = scmp.ge.s32.totalorder %s846, %s839
                  %s851 = sphi 0, %s858
                  %s852 = sphi %s842, %s861
                  %s853 = sphi %s844, %s862
                $region92: #{tpu_custom_call.1} parent=81 // loop_header_branch
                  %850 = sbr.rel (%p847) target = $region96
                $region93: #{tpu_custom_call.1} parent=81 // loop_body
                  %v854 = vld [vmem:[%s852] sm:$0xff]
                  %855 = vst [vmem:[%s853] sm:$0xff] %v854
                  %s856 = sadd.s32 1, %s851
                  %p857 = scmp.ge.s32.totalorder %s856, %s839
                  %s858 = scalar_select %p857, 0, %s856
                  %s859 = smul.u32 %s858, 8
                  %s860 = smul.u32 %s858, 8
                  %s861 = scalar_lea.vmem %s842, %s859 [#allocation3]
                  %s862 = scalar_lea.vmem %s844, %s860
                $region94: #{tpu_custom_call.1} parent=81 // loop_footer
                  %s848 = sadd.s32 %s846, 1
                $region95: #{tpu_custom_call.1} parent=81 // loop_footer_branch
                  %845 = sbr.rel target = $region91
                $region96: #{tpu_custom_call.1} parent=81 // loop_exit
                  _
              $region82: #{tpu_custom_call.1} parent=59 // pred_fallthru
                _
              // Predicated region
              $region97: #{tpu_custom_call.1} parent=59 // pred_check
                _
              $region98: #{tpu_custom_call.1} parent=59 // pred_check_branch
                %864 = sbr.rel target = $region100
              $region99: #{tpu_custom_call.1} parent=59 // pred_region
                _
              $region100: #{tpu_custom_call.1} parent=59 // pred_fallthru
                _
            $region60: #{tpu_custom_call.1} parent=55 // pred_fallthru
              _
            // Predicated region
            $region61: #{tpu_custom_call.1} parent=55 // pred_check
              _
            $region62: #{tpu_custom_call.1} parent=55 // pred_check_branch
              %710 = sbr.rel target = $region64
            $region63: #{tpu_custom_call.1} parent=55 // pred_region
              %s712 = ssub.s32 256, 1
              %s713 = sshrl.u32 %s699, 4
              // While loop
              $region65: #{tpu_custom_call.1} parent=63 // loop_pre_header
                _
              $region66: #{tpu_custom_call.1} parent=63 // loop_header
                %s715 = sphi 0, %s717
                %p716 = scmp.ge.s32.totalorder %s715, %s713
                %s720 = sphi 0, %s757
                %s721 = sphi %s692, %s760
                %s722 = sphi %s703, %s761
              $region67: #{tpu_custom_call.1} parent=63 // loop_header_branch
                %719 = sbr.rel (%p716) target = $region71
              $region68: #{tpu_custom_call.1} parent=63 // loop_body
                %v723 = vld [vmem:[%s721] sm:%s712]
                %724 = vst [vmem:[%s722] sm:%s712] %v723
                %v725 = vld [vmem:[%s721 + $0x8] sm:%s712]
                %726 = vst [vmem:[%s722 + $0x8] sm:%s712] %v725
                %v727 = vld [vmem:[%s721 + $0x10] sm:%s712]
                %728 = vst [vmem:[%s722 + $0x10] sm:%s712] %v727
                %v729 = vld [vmem:[%s721 + $0x18] sm:%s712]
                %730 = vst [vmem:[%s722 + $0x18] sm:%s712] %v729
                %v731 = vld [vmem:[%s721 + $0x20] sm:%s712]
                %732 = vst [vmem:[%s722 + $0x20] sm:%s712] %v731
                %v733 = vld [vmem:[%s721 + $0x28] sm:%s712]
                %734 = vst [vmem:[%s722 + $0x28] sm:%s712] %v733
                %v735 = vld [vmem:[%s721 + $0x30] sm:%s712]
                %736 = vst [vmem:[%s722 + $0x30] sm:%s712] %v735
                %v737 = vld [vmem:[%s721 + $0x38] sm:%s712]
                %738 = vst [vmem:[%s722 + $0x38] sm:%s712] %v737
                %v739 = vld [vmem:[%s721 + $0x40] sm:%s712]
                %740 = vst [vmem:[%s722 + $0x40] sm:%s712] %v739
                %v741 = vld [vmem:[%s721 + $0x48] sm:%s712]
                %742 = vst [vmem:[%s722 + $0x48] sm:%s712] %v741
                %v743 = vld [vmem:[%s721 + $0x50] sm:%s712]
                %744 = vst [vmem:[%s722 + $0x50] sm:%s712] %v743
                %v745 = vld [vmem:[%s721 + $0x58] sm:%s712]
                %746 = vst [vmem:[%s722 + $0x58] sm:%s712] %v745
                %v747 = vld [vmem:[%s721 + $0x60] sm:%s712]
                %748 = vst [vmem:[%s722 + $0x60] sm:%s712] %v747
                %v749 = vld [vmem:[%s721 + $0x68] sm:%s712]
                %750 = vst [vmem:[%s722 + $0x68] sm:%s712] %v749
                %v751 = vld [vmem:[%s721 + $0x70] sm:%s712]
                %752 = vst [vmem:[%s722 + $0x70] sm:%s712] %v751
                %v753 = vld [vmem:[%s721 + $0x78] sm:%s712]
                %754 = vst [vmem:[%s722 + $0x78] sm:%s712] %v753
                %s755 = sadd.s32 1, %s720
                %p756 = scmp.ge.s32.totalorder %s755, %s713
                %s757 = scalar_select %p756, 0, %s755
                %s758 = smul.u32 %s757, 128
                %s759 = smul.u32 %s757, 128
                %s760 = scalar_lea.vmem %s692, %s758 [#allocation3]
                %s761 = scalar_lea.vmem %s703, %s759
              $region69: #{tpu_custom_call.1} parent=63 // loop_footer
                %s717 = sadd.s32 %s715, 1
              $region70: #{tpu_custom_call.1} parent=63 // loop_footer_branch
                %714 = sbr.rel target = $region66
              $region71: #{tpu_custom_call.1} parent=63 // loop_exit
                _
              %s762 = sshrl.u32 %s699, 4
              %s763 = sand.u32 %s699, 15
              %s764 = smul.u32 %s762, 16
              %s765 = smul.u32 8, %s764
              %s766 = scalar_lea.vmem %s692, %s765 [#allocation3]
              %s767 = smul.u32 8, %s764
              %s768 = scalar_lea.vmem %s703, %s767
              // While loop
              $region72: #{tpu_custom_call.1} parent=63 // loop_pre_header
                _
              $region73: #{tpu_custom_call.1} parent=63 // loop_header
                %s770 = sphi 0, %s772
                %p771 = scmp.ge.s32.totalorder %s770, %s763
                %s775 = sphi 0, %s782
                %s776 = sphi %s766, %s785
                %s777 = sphi %s768, %s786
              $region74: #{tpu_custom_call.1} parent=63 // loop_header_branch
                %774 = sbr.rel (%p771) target = $region78
              $region75: #{tpu_custom_call.1} parent=63 // loop_body
                %v778 = vld [vmem:[%s776] sm:%s712]
                %779 = vst [vmem:[%s777] sm:%s712] %v778
                %s780 = sadd.s32 1, %s775
                %p781 = scmp.ge.s32.totalorder %s780, %s763
                %s782 = scalar_select %p781, 0, %s780
                %s783 = smul.u32 %s782, 8
                %s784 = smul.u32 %s782, 8
                %s785 = scalar_lea.vmem %s766, %s783 [#allocation3]
                %s786 = scalar_lea.vmem %s768, %s784
              $region76: #{tpu_custom_call.1} parent=63 // loop_footer
                %s772 = sadd.s32 %s770, 1
              $region77: #{tpu_custom_call.1} parent=63 // loop_footer_branch
                %769 = sbr.rel target = $region73
              $region78: #{tpu_custom_call.1} parent=63 // loop_exit
                _
            $region64: #{tpu_custom_call.1} parent=55 // pred_fallthru
              _
          $region56: #{tpu_custom_call.1} parent=51 // pred_fallthru
            _
          %865 = vnop
        $region52: #{tpu_custom_call.1} parent=47 // pred_fallthru
          _
      $region48: #{tpu_custom_call.1} parent=5 // pred_fallthru
        _
      %p866 = scmp.le.s32.totalorder 2, %s15
      // Predicated region
      $region101: #{tpu_custom_call.1} parent=5 // pred_check
        %p867 = pneg %p866
      $region102: #{tpu_custom_call.1} parent=5 // pred_check_branch
        %869 = sbr.rel (%p867) target = $region104
      $region103: #{tpu_custom_call.1} parent=5 // pred_region
        %s870 = ssub.s32 %s15, 2
        // Predicated region
        $region105: #{tpu_custom_call.1} parent=103 // pred_check
          %p871 = pneg %p196
        $region106: #{tpu_custom_call.1} parent=103 // pred_check_branch
          %873 = sbr.rel (%p871) target = $region108
        $region107: #{tpu_custom_call.1} parent=103 // pred_region
          %s874 = sand.u32 %s181, 1
          %s875 = sand.u32 %s181, 1
          %s876 = smul.addr %s875, 128
          %s877 = scalar_lea.vmem [#allocation3], %s876
        $region108: #{tpu_custom_call.1} parent=103 // pred_fallthru
          _
      $region104: #{tpu_custom_call.1} parent=5 // pred_fallthru
        _
    $region6: #{tpu_custom_call.1} parent=1 // loop_footer
      %s19 = sadd.s32 1, %s15
    $region7: #{tpu_custom_call.1} parent=1 // loop_footer_branch
      %14 = sbr.rel target = $region3
    $region8: #{tpu_custom_call.1} parent=1 // loop_exit
      _

</llo_original>
